<compile_context>
chip_gen: v5e
topology: v5e:2x2
jax: 0.10.0
libtpu: 0.0.40
codegen_flags: <defaults>
</compile_context>

<pallas_src>
import functools

import jax
import jax.numpy as jnp
from jax.experimental import pallas as pl
from jax.experimental.pallas import tpu as pltpu


def _round_up(v: int, m: int) -> int:
    return (v + m - 1) // m * m


def residual_block_kernel(x_ref, w_ref, b_ref, o_ref, *, num_layers):
    """out = x + relu(L_{n-1}(... relu(L_0(x)) ...)), fully in VMEM for one batch tile.

    x_ref: (TB, Hp) f32   -- streamed per grid step
    w_ref: (L, Hp, Hp) bf16, already in (in, out) layout -> no transpose in the loop
    b_ref: (L, Hp) f32    -- resident
    o_ref: (TB, Hp) f32
    """
    x = x_ref[...]                              # (TB, Hp) f32, kept for the residual add
    h = x.astype(jnp.bfloat16)                  # single down-cast feeding the MXU chain

    # TODO(synk): activation is fixed to ReLU; an arbitrary Python activation callable
    # from the PyTorch module cannot be passed into the kernel.
    # L is small & static here, so a static unroll is fine; for large L put the layer
    # index on a trailing "arbitrary" grid axis and stream weights per layer instead.
    for i in range(num_layers):
        w = w_ref[i]                            # (Hp, Hp) bf16, (in, out): direct MXU RHS
        b = b_ref[pl.ds(i, 1), :]               # (1, Hp) f32 row, broadcasts over TB
        y = jnp.dot(h, w, preferred_element_type=jnp.float32) + b   # f32 accumulate
        a = jnp.maximum(y, 0.0)                 # ReLU in f32 (v5e: no bf16 VALU)
        h = a.astype(jnp.bfloat16) if i + 1 < num_layers else a

    o_ref[...] = x + h                          # residual add in f32


def residual_block(x, weights, biases, *, block_b: int = 128):
    """x: (B, H) f32; weights: (L, H, H) PyTorch (out, in) layout; biases: (L, H)."""
    B, H = x.shape
    L = weights.shape[0]
    assert weights.shape == (L, H, H), weights.shape
    assert biases.shape == (L, H), biases.shape

    Hp = _round_up(H, 128)                      # lane-dense feature dim
    TB = min(block_b, _round_up(B, 8))          # sublane-aligned batch tile
    Bp = _round_up(B, TB)

    # One-time host-side prep (outside the kernel, not per layer):
    #   transpose to (in, out), cast weights to bf16, zero-pad to aligned shapes.
    w_t = jnp.swapaxes(weights, 1, 2).astype(jnp.bfloat16)        # (L, H_in, H_out)
    b_f = biases.astype(jnp.float32)
    x_f = x.astype(jnp.float32)
    if (Bp, Hp) != (B, H):
        w_p = jnp.zeros((L, Hp, Hp), jnp.bfloat16).at[:, :H, :H].set(w_t)
        b_p = jnp.zeros((L, Hp), jnp.float32).at[:, :H].set(b_f)
        x_p = jnp.zeros((Bp, Hp), jnp.float32).at[:B, :H].set(x_f)
    else:
        w_p, b_p, x_p = w_t, b_f, x_f

    # VMEM budget: resident weights/biases + double-buffered f32 in/out tiles.
    bytes_w = L * Hp * Hp * 2                   # bf16 weights
    bytes_b = L * Hp * 4                        # f32 biases
    bytes_act = 2 * 2 * TB * Hp * 4             # 2 buffers x (x tile + out tile), f32
    needed = bytes_w + bytes_b + bytes_act
    # Leave headroom; cap well under the v7x 64 MiB physical VMEM.
    vmem_limit = int(min(max(2 * needed, 32 * 1024 * 1024), 48 * 1024 * 1024))

    kernel = functools.partial(residual_block_kernel, num_layers=L)

    out = pl.pallas_call(
        kernel,
        out_shape=jax.ShapeDtypeStruct((Bp, Hp), jnp.float32),
        grid=(Bp // TB,),
        in_specs=[
            pl.BlockSpec((TB, Hp), lambda i: (i, 0)),       # x: streamed batch tiles
            pl.BlockSpec((L, Hp, Hp), lambda i: (0, 0, 0)),  # weights: VMEM-resident
            pl.BlockSpec((L, Hp), lambda i: (0, 0)),         # biases: VMEM-resident
        ],
        out_specs=pl.BlockSpec((TB, Hp), lambda i: (i, 0)),
        compiler_params=pltpu.CompilerParams(
            dimension_semantics=("parallel",),               # megacore on v7x
            vmem_limit_bytes=vmem_limit,
        ),
    )(x_p, w_p, b_p)

    return out[:B, :H]


def reference_f32(x, weights, biases):
    h = x
    for i in range(weights.shape[0]):
        h = jnp.maximum(h @ weights[i].T + biases[i][None, :], 0.0)
    return x + h


def reference_bf16(x, weights, biases):
    """Mirrors the kernel's bf16-matmul / f32-accumulate numerics."""
    L = weights.shape[0]
    h = x.astype(jnp.bfloat16)
    for i in range(L):
        y = jnp.dot(h, weights[i].T.astype(jnp.bfloat16),
                    preferred_element_type=jnp.float32) + biases[i][None, :]
        a = jnp.maximum(y, 0.0)
        h = a.astype(jnp.bfloat16) if i + 1 < L else a
    return x + h


if __name__ == "__main__":
    key = jax.random.PRNGKey(0)
    B, H, L = 256, 128, 2            # units = [128, 128]; lane-aligned H, 2 grid steps

    kx, kw, kb = jax.random.split(key, 3)
    x = jax.random.normal(kx, (B, H), dtype=jnp.float32)

    # Deterministic param init mimicking nn.Linear's U(-1/sqrt(in), 1/sqrt(in))
    bound = 1.0 / jnp.sqrt(jnp.float32(H))
    weights = jax.random.uniform(kw, (L, H, H), jnp.float32, -bound, bound)
    biases = jax.random.uniform(kb, (L, H), jnp.float32, -bound, bound)

    out = jax.block_until_ready(residual_block(x, weights, biases))
    assert out.shape == (B, H)

    ref_q = reference_bf16(x, weights, biases)   # same numerics as the kernel
    ref_f = reference_f32(x, weights, biases)    # full-precision sanity check
    assert jnp.allclose(out, ref_q, atol=1e-3, rtol=1e-3), "mismatch vs bf16 reference"
    assert jnp.allclose(out, ref_f, atol=5e-2, rtol=5e-2), "mismatch vs f32 reference"

    print("KERNEL_OK")
</pallas_src>

<mosaic_0001>
module attributes {stable_mosaic.version = 11 : i64} {
  func.func @residual_block_kernel(%arg0: i32, %arg1: memref<128x128xf32, #tpu.memory_space<vmem>>, %arg2: memref<2x128x128xbf16, #tpu.memory_space<vmem>>, %arg3: memref<2x128xf32, #tpu.memory_space<vmem>>, %arg4: memref<128x128xf32, #tpu.memory_space<vmem>>) attributes {dimension_semantics = [#tpu.dimension_semantics<parallel>], iteration_bounds = array<i64: 2>, scalar_prefetch = 0 : i64, scratch_operands = 0 : i64, tpu.core_type = #tpu.core_type<tc>, window_params = [{transform_indices = @transform_0, window_bounds = array<i64: 128, 128>}, {pipeline_mode = #tpu.pipeline_mode<synchronous>, transform_indices = @transform_1, window_bounds = array<i64: 2, 128, 128>}, {pipeline_mode = #tpu.pipeline_mode<synchronous>, transform_indices = @transform_2, window_bounds = array<i64: 2, 128>}, {transform_indices = @transform_3, window_bounds = array<i64: 128, 128>}]} {
    %c0 = arith.constant 0 : index
    %c0_0 = arith.constant 0 : index
    %0 = vector.load %arg1[%c0, %c0_0] : memref<128x128xf32, #tpu.memory_space<vmem>>, vector<128x128xf32>
    %1 = arith.truncf %0 : vector<128x128xf32> to vector<128x128xbf16>
    %c0_1 = arith.constant 0 : index
    %c0_2 = arith.constant 0 : index
    %c0_3 = arith.constant 0 : index
    %2 = vector.load %arg2[%c0_1, %c0_2, %c0_3] : memref<2x128x128xbf16, #tpu.memory_space<vmem>>, vector<1x128x128xbf16>
    %3 = vector.shape_cast %2 : vector<1x128x128xbf16> to vector<128x128xbf16>
    %c0_4 = arith.constant 0 : index
    %c0_5 = arith.constant 0 : index
    %4 = vector.load %arg3[%c0_4, %c0_5] : memref<2x128xf32, #tpu.memory_space<vmem>>, vector<1x128xf32>
    %cst = arith.constant dense<0.000000e+00> : vector<128x128xf32>
    %5 = tpu.matmul %1, %3, %cst {dimension_numbers = #tpu.dot_dimension_numbers<[1], [0], [0], [1], [0, 0, 1, 1], [], []>} : vector<128x128xbf16>, vector<128x128xbf16>, vector<128x128xf32> -> vector<128x128xf32>
    %6 = vector.broadcast %4 : vector<1x128xf32> to vector<128x128xf32>
    %7 = arith.addf %5, %6 : vector<128x128xf32>
    %cst_6 = arith.constant 0.000000e+00 : f32
    %8 = vector.broadcast %cst_6 : f32 to vector<128x128xf32>
    %9 = arith.maximumf %7, %8 : vector<128x128xf32>
    %10 = arith.truncf %9 : vector<128x128xf32> to vector<128x128xbf16>
    %c1 = arith.constant 1 : index
    %c0_7 = arith.constant 0 : index
    %c0_8 = arith.constant 0 : index
    %11 = vector.load %arg2[%c1, %c0_7, %c0_8] : memref<2x128x128xbf16, #tpu.memory_space<vmem>>, vector<1x128x128xbf16>
    %12 = vector.shape_cast %11 : vector<1x128x128xbf16> to vector<128x128xbf16>
    %c1_9 = arith.constant 1 : index
    %c0_10 = arith.constant 0 : index
    %13 = vector.load %arg3[%c1_9, %c0_10] : memref<2x128xf32, #tpu.memory_space<vmem>>, vector<1x128xf32>
    %cst_11 = arith.constant dense<0.000000e+00> : vector<128x128xf32>
    %14 = tpu.matmul %10, %12, %cst_11 {dimension_numbers = #tpu.dot_dimension_numbers<[1], [0], [0], [1], [0, 0, 1, 1], [], []>} : vector<128x128xbf16>, vector<128x128xbf16>, vector<128x128xf32> -> vector<128x128xf32>
    %15 = vector.broadcast %13 : vector<1x128xf32> to vector<128x128xf32>
    %16 = arith.addf %14, %15 : vector<128x128xf32>
    %cst_12 = arith.constant 0.000000e+00 : f32
    %17 = vector.broadcast %cst_12 : f32 to vector<128x128xf32>
    %18 = arith.maximumf %16, %17 : vector<128x128xf32>
    %19 = arith.addf %0, %18 : vector<128x128xf32>
    %c0_13 = arith.constant 0 : index
    %c0_14 = arith.constant 0 : index
    %20 = vector.load %arg4[%c0_13, %c0_14] : memref<128x128xf32, #tpu.memory_space<vmem>>, vector<128x128xf32>
    tpu.vector_store %arg4[%c0_13, %c0_14], %19 {strides = array<i32>} : memref<128x128xf32, #tpu.memory_space<vmem>>, vector<128x128xf32>,
    return
  }
  func.func @transform_0(%arg0: i32) -> (i32, i32) {
    %c0_i32 = arith.constant 0 : i32
    %c0_i32_0 = arith.constant 0 : i32
    return %arg0, %c0_i32 : i32, i32
  }
  func.func @transform_1(%arg0: i32) -> (i32, i32, i32) {
    %c0_i32 = arith.constant 0 : i32
    %c0_i32_0 = arith.constant 0 : i32
    %c0_i32_1 = arith.constant 0 : i32
    %c0_i32_2 = arith.constant 0 : i32
    return %c0_i32, %c0_i32_0, %c0_i32_1 : i32, i32, i32
  }
  func.func @transform_2(%arg0: i32) -> (i32, i32) {
    %c0_i32 = arith.constant 0 : i32
    %c0_i32_0 = arith.constant 0 : i32
    %c0_i32_1 = arith.constant 0 : i32
    return %c0_i32, %c0_i32_0 : i32, i32
  }
  func.func @transform_3(%arg0: i32) -> (i32, i32) {
    %c0_i32 = arith.constant 0 : i32
    %c0_i32_0 = arith.constant 0 : i32
    return %arg0, %c0_i32 : i32, i32
  }
}

</mosaic_0001>

<llo_original>
// kernel: tpu_custom_call.1
$region0: #{tpu_custom_call.1}
  #allocation0 [shape = 'u32[]', space=smem, size = 0x4, offset = 0x4, fixed_abs, tag = 'smem constant byte address 0x4 - core index']
  #allocation1 [shape = 'u32[72,128]{1,0:T(1,128)}', space=vmem, size = 0x9000, scoped, tag = 'internal scratch']
  %s0 = inlined_call_operand.hbm [shape: f32[256,128], index: 0, kind: input, shape index: {}]
  %s1 = inlined_call_operand.hbm [shape: bf16[2,128,128], index: 1, kind: input, shape index: {}]
  %s2 = inlined_call_operand.hbm [shape: f32[2,128], index: 2, kind: input, shape index: {}]
  %s3 = inlined_call_operand.hbm [shape: f32[256,128], index: 3, kind: output, shape index: {}]
  %s4 = sld [smem:[#allocation0]]
  $region57: #{tpu_custom_call.1} parent=0
    _
  %s6 = ssub.s32 1, %s4
  %s7 = scalar_select 0, %s6, %s4
  $region1: #{tpu_custom_call.1} parent=0
    #allocation2 [shape = 'u8[131072]{0}', space=vmem, size = 0x20000, scoped, tag = 'input window, operand 0']
    #allocation3 [shape = 's32[2]{0}', space=sflag, size = 0x8, scoped, tag = 'scoped memory for tpu_custom_call.1']
    #allocation4 [shape = 's32[2]{0}', space=sflag, size = 0x8, scoped, tag = 'scoped memory for tpu_custom_call.1']
    #allocation5 [shape = 'u8[65536]{0}', space=vmem, size = 0x10000, scoped, tag = 'input window, operand 1, single buffered']
    #allocation6 [shape = 's32[1]{0}', space=sflag, size = 0x4, scoped, tag = 'scoped memory for tpu_custom_call.1']
    #allocation7 [shape = 'u8[1024]{0}', space=vmem, size = 0x400, scoped, tag = 'input window, operand 2, single buffered']
    #allocation8 [shape = 'u8[131072]{0}', space=vmem, size = 0x20000, scoped, tag = 'output window, operand 0']
    %8 = vsyncpa [#allocation3], 0
    %s9 = scalar_lea.sflag [#allocation3], 1
    %10 = vsyncpa %s9, 0
    %11 = vsyncpa [#allocation6], 0
    %12 = vsyncpa [#allocation4], 0
    %s13 = scalar_lea.sflag [#allocation4], 1
    %14 = vsyncpa %s13, 0
    loop: start=0, step=1, limit=4
    $region2: #{tpu_custom_call.1} parent=1 // loop_pre_header
      _
    $region3: #{tpu_custom_call.1} parent=1 // loop_header
      %s16 = sphi 0, %s20
      %p17 = scmp.ge.s32.totalorder %s16, 4
      %s26 = sphi 0, %s28
      %s29 = sphi 0, %s26
      %s30 = sphi 0, %s29
      %s46 = sphi 0, %s30
      %s50 = sphi 0, %s50
      %s52 = sphi 0, %s50
      %s53 = sphi 0, %s52
      %s67 = sphi 0, %s53
      %s71 = sphi 0, %s71
      %s73 = sphi 0, %s71
      %s74 = sphi 0, %s73
      %s88 = sphi 0, %s74
      %s94 = sphi 0, %s96
      %s97 = sphi 0, %s94
      %s98 = sphi 0, %s97
      %s114 = sphi 0, %s98
    $region4: #{tpu_custom_call.1} parent=1 // loop_header_branch
      %19 = sbr.rel (%p17) target = $region8
    $region5: #{tpu_custom_call.1} parent=1 // loop_body
      %s21 = ssub.s32 %s16, 1
      %s22 = ssub.s32 %s16, 2
      %s23 = sadd.s32 %s16, 1
      %s24 = ssub.s32 %s16, %s23
      %p25 = scmp.eq.s32.totalorder %s24, 0
      %s27 = sadd.s32 %s26, 1
      %s28 = scalar_select %p25, %s26, %s27
      %p31 = pneg %p25
      %p32 = scmp.eq.s32.totalorder %s16, 1
      %p33 = por %p31, %p32
      %p34 = scmp.ne.s32.totalorder %s26, %s29
      %p35 = scmp.eq.s32.totalorder %s16, 0
      %p36 = por %p34, %p35
      %p37 = scmp.ne.s32.totalorder %s26, %s29
      %p38 = scmp.eq.s32.totalorder %s21, 1
      %p39 = por %p37, %p38
      %p40 = scmp.ne.s32.totalorder %s29, %s30
      %p41 = scmp.eq.s32.totalorder %s21, 0
      %p42 = por %p40, %p41
      %p43 = scmp.ne.s32.totalorder %s29, %s30
      %p44 = scmp.eq.s32.totalorder %s22, 1
      %p45 = por %p43, %p44
      %p47 = scmp.ne.s32.totalorder %s30, %s46
      %p48 = scmp.eq.s32.totalorder %s22, 0
      %p49 = por %p47, %p48
      %s51 = sadd.s32 %s50, 1
      %p54 = scmp.eq.s32.totalorder %s16, 1
      %p55 = scmp.ne.s32.totalorder %s50, %s52
      %p56 = scmp.eq.s32.totalorder %s16, 0
      %p57 = por %p55, %p56
      %p58 = scmp.ne.s32.totalorder %s50, %s52
      %p59 = scmp.eq.s32.totalorder %s21, 1
      %p60 = por %p58, %p59
      %p61 = scmp.ne.s32.totalorder %s52, %s53
      %p62 = scmp.eq.s32.totalorder %s21, 0
      %p63 = por %p61, %p62
      %p64 = scmp.ne.s32.totalorder %s52, %s53
      %p65 = scmp.eq.s32.totalorder %s22, 1
      %p66 = por %p64, %p65
      %p68 = scmp.ne.s32.totalorder %s53, %s67
      %p69 = scmp.eq.s32.totalorder %s22, 0
      %p70 = por %p68, %p69
      %s72 = sadd.s32 %s71, 1
      %p75 = scmp.eq.s32.totalorder %s16, 1
      %p76 = scmp.ne.s32.totalorder %s71, %s73
      %p77 = scmp.eq.s32.totalorder %s16, 0
      %p78 = por %p76, %p77
      %p79 = scmp.ne.s32.totalorder %s71, %s73
      %p80 = scmp.eq.s32.totalorder %s21, 1
      %p81 = por %p79, %p80
      %p82 = scmp.ne.s32.totalorder %s73, %s74
      %p83 = scmp.eq.s32.totalorder %s21, 0
      %p84 = por %p82, %p83
      %p85 = scmp.ne.s32.totalorder %s73, %s74
      %p86 = scmp.eq.s32.totalorder %s22, 1
      %p87 = por %p85, %p86
      %p89 = scmp.ne.s32.totalorder %s74, %s88
      %p90 = scmp.eq.s32.totalorder %s22, 0
      %p91 = por %p89, %p90
      %s92 = ssub.s32 %s16, %s23
      %p93 = scmp.eq.s32.totalorder %s92, 0
      %s95 = sadd.s32 %s94, 1
      %s96 = scalar_select %p93, %s94, %s95
      %p99 = pneg %p93
      %p100 = scmp.eq.s32.totalorder %s16, 1
      %p101 = por %p99, %p100
      %p102 = scmp.ne.s32.totalorder %s94, %s97
      %p103 = scmp.eq.s32.totalorder %s16, 0
      %p104 = por %p102, %p103
      %p105 = scmp.ne.s32.totalorder %s94, %s97
      %p106 = scmp.eq.s32.totalorder %s21, 1
      %p107 = por %p105, %p106
      %p108 = scmp.ne.s32.totalorder %s97, %s98
      %p109 = scmp.eq.s32.totalorder %s21, 0
      %p110 = por %p108, %p109
      %p111 = scmp.ne.s32.totalorder %s97, %s98
      %p112 = scmp.eq.s32.totalorder %s22, 1
      %p113 = por %p111, %p112
      %p115 = scmp.ne.s32.totalorder %s98, %s114
      %p116 = scmp.eq.s32.totalorder %s22, 0
      %p117 = por %p115, %p116
      %p118 = scmp.le.s32.totalorder 1, %s16
      %p119 = scmp.lt.s32.totalorder %s16, 3
      %p120 = pnand %p118, %p119
      %p121 = pneg %p120
      // Predicated region
      $region9: #{tpu_custom_call.1} parent=5 // pred_check
        _
      $region10: #{tpu_custom_call.1} parent=5 // pred_check_branch
        %123 = sbr.rel (%p120) target = $region12
      $region11: #{tpu_custom_call.1} parent=5 // pred_region
        %s124 = ssub.s32 %s16, 1
        // Predicated region
        $region13: #{tpu_custom_call.1} parent=11 // pred_check
          %p125 = pneg %p63
        $region14: #{tpu_custom_call.1} parent=11 // pred_check_branch
          %127 = sbr.rel (%p125) target = $region16
        $region15: #{tpu_custom_call.1} parent=11 // pred_region
          %129 = vsyncadd [#allocation6], 0
          %s130 = sshll.u32 %s1, 4
          %s131 = int_to_ptr.hbm [resolvable:$true] %s130
          %s132 = sshll.u32 [#allocation5], 4
          %s133 = int_to_ptr.vmem [resolvable:$true] %s132
          %138 = dma.hbm_to_vmem [thread:$0]  %s131, 2048, %s133, [#allocation6], 64, 64, 4
        $region16: #{tpu_custom_call.1} parent=11 // pred_fallthru
          _
        // Predicated region
        $region17: #{tpu_custom_call.1} parent=11 // pred_check
          %p139 = pneg %p84
        $region18: #{tpu_custom_call.1} parent=11 // pred_check_branch
          %141 = sbr.rel (%p139) target = $region20
        $region19: #{tpu_custom_call.1} parent=11 // pred_region
          %143 = vsyncadd [#allocation6], 0
          %s145 = sshll.u32 %s2, 4
          %s146 = int_to_ptr.hbm [resolvable:$true] %s145
          %s147 = sshll.u32 [#allocation7], 4
          %s148 = int_to_ptr.vmem [resolvable:$true] %s147
          %150 = dma.hbm_to_vmem [thread:$0]  %s146, 32, %s148, [#allocation6]
        $region20: #{tpu_custom_call.1} parent=11 // pred_fallthru
          _
      $region12: #{tpu_custom_call.1} parent=5 // pred_fallthru
        _
      %p151 = scmp.lt.s32.totalorder %s16, 2
      // Predicated region
      $region21: #{tpu_custom_call.1} parent=5 // pred_check
        %p152 = pneg %p151
      $region22: #{tpu_custom_call.1} parent=5 // pred_check_branch
        %154 = sbr.rel (%p152) target = $region24
      $region23: #{tpu_custom_call.1} parent=5 // pred_region
        // Predicated region
        $region25: #{tpu_custom_call.1} parent=23 // pred_check
          %p155 = pneg %p36
        $region26: #{tpu_custom_call.1} parent=23 // pred_check_branch
          %157 = sbr.rel (%p155) target = $region28
        $region27: #{tpu_custom_call.1} parent=23 // pred_region
          %s158 = sand.u32 %s26, 1
          %s159 = scalar_lea.sflag [#allocation3], %s158
          %s160 = sand.u32 %s26, 1
          %s161 = smul.addr %s160, 128
          %s162 = scalar_lea.vmem [#allocation2], %s161
          %s163 = smul.u32 16, %s16
          %165 = vsyncadd %s159, 0
          %s166 = smul.addr %s163, 8
          %s167 = scalar_lea.hbm %s0, %s166
          %s168 = sshll.u32 %s167, 4
          %s169 = int_to_ptr.hbm [resolvable:$true] %s168
          %s170 = sshll.u32 %s162, 4
          %s171 = int_to_ptr.vmem [resolvable:$true] %s170
          %176 = dma.hbm_to_vmem [thread:$0]  %s169, 2048, %s171, %s159, 128, 128, 8
        $region28: #{tpu_custom_call.1} parent=23 // pred_fallthru
          _
      $region24: #{tpu_custom_call.1} parent=5 // pred_fallthru
        _
      %p177 = scmp.le.s32.totalorder 1, %s16
      %p178 = scmp.lt.s32.totalorder %s16, 3
      %p179 = pnand %p177, %p178
      %p180 = pneg %p179
      // Predicated region
      $region29: #{tpu_custom_call.1} parent=5 // pred_check
        _
      $region30: #{tpu_custom_call.1} parent=5 // pred_check_branch
        %182 = sbr.rel (%p179) target = $region32
      $region31: #{tpu_custom_call.1} parent=5 // pred_region
        %s183 = ssub.s32 %s16, 1
        %s184 = sand.u32 %s29, 1
        %s185 = scalar_lea.sflag [#allocation3], %s184
        %s186 = sand.u32 %s29, 1
        %s187 = smul.addr %s186, 128
        %s188 = scalar_lea.vmem [#allocation2], %s187
        // Predicated region
        $region33: #{tpu_custom_call.1} parent=31 // pred_check
          %p189 = pneg %p42
        $region34: #{tpu_custom_call.1} parent=31 // pred_check_branch
          %191 = sbr.rel (%p189) target = $region36
        $region35: #{tpu_custom_call.1} parent=31 // pred_region
          %193 = dma.done %s185, 2048
        $region36: #{tpu_custom_call.1} parent=31 // pred_fallthru
          _
        // Predicated region
        $region37: #{tpu_custom_call.1} parent=31 // pred_check
          %p194 = pneg %p63
        $region38: #{tpu_custom_call.1} parent=31 // pred_check_branch
          %196 = sbr.rel (%p194) target = $region40
        $region39: #{tpu_custom_call.1} parent=31 // pred_region
          %198 = dma.done [#allocation6], 2048
        $region40: #{tpu_custom_call.1} parent=31 // pred_fallthru
          _
        // Predicated region
        $region41: #{tpu_custom_call.1} parent=31 // pred_check
          %p199 = pneg %p84
        $region42: #{tpu_custom_call.1} parent=31 // pred_check_branch
          %201 = sbr.rel (%p199) target = $region44
        $region43: #{tpu_custom_call.1} parent=31 // pred_region
          %203 = dma.done [#allocation6], 32
        $region44: #{tpu_custom_call.1} parent=31 // pred_fallthru
          _
        %s204 = sand.u32 %s29, 1
        %s205 = scalar_lea.sflag [#allocation3], %s204
        %s206 = sand.u32 %s29, 1
        %s207 = smul.addr %s206, 128
        %s208 = scalar_lea.vmem [#allocation2], %s207
        %p209 = pneg %p42
        %p210 = pneg %p39
        %p211 = pneg %p63
        %p212 = pneg %p60
        %p213 = pneg %p84
        %p214 = pneg %p81
        %p215 = pneg %p110
        %p216 = pneg %p107
        %s217 = sand.u32 %s97, 1
        %s218 = scalar_lea.sflag [#allocation4], %s217
        %s219 = sand.u32 %s97, 1
        %s220 = smul.addr %s219, 128
        %s221 = scalar_lea.vmem [#allocation8], %s220
        %s222 = smul.u32 16, %s21
        %s223 = smul.u32 16, %s21
        %v224 = vld [vmem:[%s188] sm:$0xff]
        %v225 = vld [vmem:[%s188 + $0x8] sm:$0xff]
        %v226 = vld [vmem:[%s188 + $0x10] sm:$0xff]
        %v227 = vld [vmem:[%s188 + $0x18] sm:$0xff]
        %v228 = vld [vmem:[%s188 + $0x20] sm:$0xff]
        %v229 = vld [vmem:[%s188 + $0x28] sm:$0xff]
        %v230 = vld [vmem:[%s188 + $0x30] sm:$0xff]
        %v231 = vld [vmem:[%s188 + $0x38] sm:$0xff]
        %v232 = vld [vmem:[%s188 + $0x40] sm:$0xff]
        %v233 = vld [vmem:[%s188 + $0x48] sm:$0xff]
        %v234 = vld [vmem:[%s188 + $0x50] sm:$0xff]
        %v235 = vld [vmem:[%s188 + $0x58] sm:$0xff]
        %v236 = vld [vmem:[%s188 + $0x60] sm:$0xff]
        %v237 = vld [vmem:[%s188 + $0x68] sm:$0xff]
        %v238 = vld [vmem:[%s188 + $0x70] sm:$0xff]
        %v239 = vld [vmem:[%s188 + $0x78] sm:$0xff]
        %v240 = vpack.c.bf16 %v225, %v224
        %v241 = vpack.c.bf16 %v227, %v226
        %v242 = vpack.c.bf16 %v229, %v228
        %v243 = vpack.c.bf16 %v231, %v230
        %v244 = vpack.c.bf16 %v233, %v232
        %v245 = vpack.c.bf16 %v235, %v234
        %v246 = vpack.c.bf16 %v237, %v236
        %v247 = vpack.c.bf16 %v239, %v238
        %v248 = vld [vmem:[#allocation5] sm:$0xf]
        %v249 = vld [vmem:[#allocation5 + $0x4] sm:$0xf]
        %v250 = vld [vmem:[#allocation5 + $0x8] sm:$0xf]
        %v251 = vld [vmem:[#allocation5 + $0xc] sm:$0xf]
        %v252 = vld [vmem:[#allocation5 + $0x10] sm:$0xf]
        %v253 = vld [vmem:[#allocation5 + $0x14] sm:$0xf]
        %v254 = vld [vmem:[#allocation5 + $0x18] sm:$0xf]
        %v255 = vld [vmem:[#allocation5 + $0x1c] sm:$0xf]
        %v256 = vld [vmem:[#allocation5 + $0x20] sm:$0xf]
        %v257 = vld [vmem:[#allocation5 + $0x24] sm:$0xf]
        %v258 = vld [vmem:[#allocation5 + $0x28] sm:$0xf]
        %v259 = vld [vmem:[#allocation5 + $0x2c] sm:$0xf]
        %v260 = vld [vmem:[#allocation5 + $0x30] sm:$0xf]
        %v261 = vld [vmem:[#allocation5 + $0x34] sm:$0xf]
        %v262 = vld [vmem:[#allocation5 + $0x38] sm:$0xf]
        %v263 = vld [vmem:[#allocation5 + $0x3c] sm:$0xf]
        %v264 = vld [vmem:[#allocation7] sm:$0x1]
        %v265 = vperm.slane %v264, 0
        %v282 = vunpack.c.l.b16 %v248
        %v283 = vunpack.c.l.b16 %v249
        %v284 = vunpack.c.l.b16 %v250
        %v285 = vunpack.c.l.b16 %v251
        %v286 = vunpack.c.l.b16 %v252
        %v287 = vunpack.c.l.b16 %v253
        %v288 = vunpack.c.l.b16 %v254
        %v289 = vunpack.c.l.b16 %v255
        %v290 = vunpack.c.l.b16 %v256
        %v291 = vunpack.c.l.b16 %v257
        %v292 = vunpack.c.l.b16 %v258
        %v293 = vunpack.c.l.b16 %v259
        %v294 = vunpack.c.l.b16 %v260
        %v295 = vunpack.c.l.b16 %v261
        %v296 = vunpack.c.l.b16 %v262
        %v297 = vunpack.c.l.b16 %v263
        %v298 = vpack.c.b16 %v283, %v282
        %v299 = vpack.c.b16 %v285, %v284
        %v300 = vpack.c.b16 %v287, %v286
        %v301 = vpack.c.b16 %v289, %v288
        %v302 = vpack.c.b16 %v291, %v290
        %v303 = vpack.c.b16 %v293, %v292
        %v304 = vpack.c.b16 %v295, %v294
        %v305 = vpack.c.b16 %v297, %v296
        %314 = vmatpush.bf16.msra.mxu0 %v305
        %315 = vmatpush.bf16.msra.mxu0 %v304
        %316 = vmatpush.bf16.msra.mxu0 %v303
        %317 = vmatpush.bf16.msra.mxu0 %v302
        %318 = vmatpush.bf16.msra.mxu0 %v301
        %319 = vmatpush.bf16.msra.mxu0 %v300
        %320 = vmatpush.bf16.msra.mxu0 %v299
        %321 = vmatpush.bf16.msra.mxu0 %v298
        %322 = vmatmul.bf16.gmra.mxu0 %v240
        %v323 = vpop.f32.mrf.mxu0
        %v324 = vadd.f32 %v265, %v323
        %v325 = vpop.f32.mrf.mxu0
        %v326 = vadd.f32 %v265, %v325
        %327 = vmatmul.bf16.gmra.mxu0 %v241
        %v328 = vpop.f32.mrf.mxu0
        %v329 = vadd.f32 %v265, %v328
        %v330 = vpop.f32.mrf.mxu0
        %v331 = vadd.f32 %v265, %v330
        %332 = vmatmul.bf16.gmra.mxu0 %v242
        %v333 = vpop.f32.mrf.mxu0
        %v334 = vadd.f32 %v265, %v333
        %v335 = vpop.f32.mrf.mxu0
        %v336 = vadd.f32 %v265, %v335
        %337 = vmatmul.bf16.gmra.mxu0 %v243
        %v338 = vpop.f32.mrf.mxu0
        %v339 = vadd.f32 %v265, %v338
        %v340 = vpop.f32.mrf.mxu0
        %v341 = vadd.f32 %v265, %v340
        %342 = vmatmul.bf16.gmra.mxu0 %v244
        %v343 = vpop.f32.mrf.mxu0
        %v344 = vadd.f32 %v265, %v343
        %v345 = vpop.f32.mrf.mxu0
        %v346 = vadd.f32 %v265, %v345
        %347 = vmatmul.bf16.gmra.mxu0 %v245
        %v348 = vpop.f32.mrf.mxu0
        %v349 = vadd.f32 %v265, %v348
        %v350 = vpop.f32.mrf.mxu0
        %v351 = vadd.f32 %v265, %v350
        %352 = vmatmul.bf16.gmra.mxu0 %v246
        %v353 = vpop.f32.mrf.mxu0
        %v354 = vadd.f32 %v265, %v353
        %v355 = vpop.f32.mrf.mxu0
        %v356 = vadd.f32 %v265, %v355
        %357 = vmatmul.bf16.gmra.mxu0 %v247
        %v358 = vpop.f32.mrf.mxu0
        %v359 = vadd.f32 %v265, %v358
        %v360 = vpop.f32.mrf.mxu0
        %v361 = vadd.f32 %v265, %v360
        %362 = vdwg.mxu0
        %v363 = vmax.f32 %v324, 0.0
        %v364 = vmax.f32 %v326, 0.0
        %v365 = vmax.f32 %v329, 0.0
        %v366 = vmax.f32 %v331, 0.0
        %v367 = vmax.f32 %v334, 0.0
        %v368 = vmax.f32 %v336, 0.0
        %v369 = vmax.f32 %v339, 0.0
        %v370 = vmax.f32 %v341, 0.0
        %v371 = vmax.f32 %v344, 0.0
        %v372 = vmax.f32 %v346, 0.0
        %v373 = vmax.f32 %v349, 0.0
        %v374 = vmax.f32 %v351, 0.0
        %v375 = vmax.f32 %v354, 0.0
        %v376 = vmax.f32 %v356, 0.0
        %v377 = vmax.f32 %v359, 0.0
        %v378 = vmax.f32 %v361, 0.0
        %v379 = vpack.c.bf16 %v364, %v363
        %v380 = vpack.c.bf16 %v366, %v365
        %v381 = vpack.c.bf16 %v368, %v367
        %v382 = vpack.c.bf16 %v370, %v369
        %v383 = vpack.c.bf16 %v372, %v371
        %v384 = vpack.c.bf16 %v374, %v373
        %v385 = vpack.c.bf16 %v376, %v375
        %v386 = vpack.c.bf16 %v378, %v377
        %s387 = scalar_lea.vmem [#allocation5], 64
        %v388 = vld [vmem:[%s387] sm:$0xf]
        %v389 = vld [vmem:[%s387 + $0x4] sm:$0xf]
        %v390 = vld [vmem:[%s387 + $0x8] sm:$0xf]
        %v391 = vld [vmem:[%s387 + $0xc] sm:$0xf]
        %v392 = vld [vmem:[%s387 + $0x10] sm:$0xf]
        %v393 = vld [vmem:[%s387 + $0x14] sm:$0xf]
        %v394 = vld [vmem:[%s387 + $0x18] sm:$0xf]
        %v395 = vld [vmem:[%s387 + $0x1c] sm:$0xf]
        %v396 = vld [vmem:[%s387 + $0x20] sm:$0xf]
        %v397 = vld [vmem:[%s387 + $0x24] sm:$0xf]
        %v398 = vld [vmem:[%s387 + $0x28] sm:$0xf]
        %v399 = vld [vmem:[%s387 + $0x2c] sm:$0xf]
        %v400 = vld [vmem:[%s387 + $0x30] sm:$0xf]
        %v401 = vld [vmem:[%s387 + $0x34] sm:$0xf]
        %v402 = vld [vmem:[%s387 + $0x38] sm:$0xf]
        %v403 = vld [vmem:[%s387 + $0x3c] sm:$0xf]
        %v404 = vld [vmem:[#allocation7 + $0x1] sm:$0x1]
        %v405 = vperm.slane %v404, 0
        %v422 = vunpack.c.l.b16 %v388
        %v423 = vunpack.c.l.b16 %v389
        %v424 = vunpack.c.l.b16 %v390
        %v425 = vunpack.c.l.b16 %v391
        %v426 = vunpack.c.l.b16 %v392
        %v427 = vunpack.c.l.b16 %v393
        %v428 = vunpack.c.l.b16 %v394
        %v429 = vunpack.c.l.b16 %v395
        %v430 = vunpack.c.l.b16 %v396
        %v431 = vunpack.c.l.b16 %v397
        %v432 = vunpack.c.l.b16 %v398
        %v433 = vunpack.c.l.b16 %v399
        %v434 = vunpack.c.l.b16 %v400
        %v435 = vunpack.c.l.b16 %v401
        %v436 = vunpack.c.l.b16 %v402
        %v437 = vunpack.c.l.b16 %v403
        %v438 = vpack.c.b16 %v423, %v422
        %v439 = vpack.c.b16 %v425, %v424
        %v440 = vpack.c.b16 %v427, %v426
        %v441 = vpack.c.b16 %v429, %v428
        %v442 = vpack.c.b16 %v431, %v430
        %v443 = vpack.c.b16 %v433, %v432
        %v444 = vpack.c.b16 %v435, %v434
        %v445 = vpack.c.b16 %v437, %v436
        %454 = vmatpush.bf16.msra.mxu0 %v445
        %455 = vmatpush.bf16.msra.mxu0 %v444
        %456 = vmatpush.bf16.msra.mxu0 %v443
        %457 = vmatpush.bf16.msra.mxu0 %v442
        %458 = vmatpush.bf16.msra.mxu0 %v441
        %459 = vmatpush.bf16.msra.mxu0 %v440
        %460 = vmatpush.bf16.msra.mxu0 %v439
        %461 = vmatpush.bf16.msra.mxu0 %v438
        %462 = vmatmul.bf16.gmra.mxu0 %v379
        %v463 = vpop.f32.mrf.mxu0
        %v464 = vadd.f32 %v405, %v463
        %v465 = vpop.f32.mrf.mxu0
        %v466 = vadd.f32 %v405, %v465
        %467 = vmatmul.bf16.gmra.mxu0 %v380
        %v468 = vpop.f32.mrf.mxu0
        %v469 = vadd.f32 %v405, %v468
        %v470 = vpop.f32.mrf.mxu0
        %v471 = vadd.f32 %v405, %v470
        %472 = vmatmul.bf16.gmra.mxu0 %v381
        %v473 = vpop.f32.mrf.mxu0
        %v474 = vadd.f32 %v405, %v473
        %v475 = vpop.f32.mrf.mxu0
        %v476 = vadd.f32 %v405, %v475
        %477 = vmatmul.bf16.gmra.mxu0 %v382
        %v478 = vpop.f32.mrf.mxu0
        %v479 = vadd.f32 %v405, %v478
        %v480 = vpop.f32.mrf.mxu0
        %v481 = vadd.f32 %v405, %v480
        %482 = vmatmul.bf16.gmra.mxu0 %v383
        %v483 = vpop.f32.mrf.mxu0
        %v484 = vadd.f32 %v405, %v483
        %v485 = vpop.f32.mrf.mxu0
        %v486 = vadd.f32 %v405, %v485
        %487 = vmatmul.bf16.gmra.mxu0 %v384
        %v488 = vpop.f32.mrf.mxu0
        %v489 = vadd.f32 %v405, %v488
        %v490 = vpop.f32.mrf.mxu0
        %v491 = vadd.f32 %v405, %v490
        %492 = vmatmul.bf16.gmra.mxu0 %v385
        %v493 = vpop.f32.mrf.mxu0
        %v494 = vadd.f32 %v405, %v493
        %v495 = vpop.f32.mrf.mxu0
        %v496 = vadd.f32 %v405, %v495
        %497 = vmatmul.bf16.gmra.mxu0 %v386
        %v498 = vpop.f32.mrf.mxu0
        %v499 = vadd.f32 %v405, %v498
        %v500 = vpop.f32.mrf.mxu0
        %v501 = vadd.f32 %v405, %v500
        %502 = vdwg.mxu0
        %v503 = vmax.f32 %v464, 0.0
        %v504 = vmax.f32 %v466, 0.0
        %v505 = vmax.f32 %v469, 0.0
        %v506 = vmax.f32 %v471, 0.0
        %v507 = vmax.f32 %v474, 0.0
        %v508 = vmax.f32 %v476, 0.0
        %v509 = vmax.f32 %v479, 0.0
        %v510 = vmax.f32 %v481, 0.0
        %v511 = vmax.f32 %v484, 0.0
        %v512 = vmax.f32 %v486, 0.0
        %v513 = vmax.f32 %v489, 0.0
        %v514 = vmax.f32 %v491, 0.0
        %v515 = vmax.f32 %v494, 0.0
        %v516 = vmax.f32 %v496, 0.0
        %v517 = vmax.f32 %v499, 0.0
        %v518 = vmax.f32 %v501, 0.0
        %v519 = vadd.f32 %v224, %v503
        %v520 = vadd.f32 %v225, %v504
        %v521 = vadd.f32 %v226, %v505
        %v522 = vadd.f32 %v227, %v506
        %v523 = vadd.f32 %v228, %v507
        %v524 = vadd.f32 %v229, %v508
        %v525 = vadd.f32 %v230, %v509
        %v526 = vadd.f32 %v231, %v510
        %v527 = vadd.f32 %v232, %v511
        %v528 = vadd.f32 %v233, %v512
        %v529 = vadd.f32 %v234, %v513
        %v530 = vadd.f32 %v235, %v514
        %v531 = vadd.f32 %v236, %v515
        %v532 = vadd.f32 %v237, %v516
        %v533 = vadd.f32 %v238, %v517
        %v534 = vadd.f32 %v239, %v518
        %535 = vst [vmem:[%s221] sm:$0xff] %v519
        %536 = vst [vmem:[%s221 + $0x8] sm:$0xff] %v520
        %537 = vst [vmem:[%s221 + $0x10] sm:$0xff] %v521
        %538 = vst [vmem:[%s221 + $0x18] sm:$0xff] %v522
        %539 = vst [vmem:[%s221 + $0x20] sm:$0xff] %v523
        %540 = vst [vmem:[%s221 + $0x28] sm:$0xff] %v524
        %541 = vst [vmem:[%s221 + $0x30] sm:$0xff] %v525
        %542 = vst [vmem:[%s221 + $0x38] sm:$0xff] %v526
        %543 = vst [vmem:[%s221 + $0x40] sm:$0xff] %v527
        %544 = vst [vmem:[%s221 + $0x48] sm:$0xff] %v528
        %545 = vst [vmem:[%s221 + $0x50] sm:$0xff] %v529
        %546 = vst [vmem:[%s221 + $0x58] sm:$0xff] %v530
        %547 = vst [vmem:[%s221 + $0x60] sm:$0xff] %v531
        %548 = vst [vmem:[%s221 + $0x68] sm:$0xff] %v532
        %549 = vst [vmem:[%s221 + $0x70] sm:$0xff] %v533
        %550 = vst [vmem:[%s221 + $0x78] sm:$0xff] %v534
        %s551 = sand.u32 %s97, 1
        %s552 = scalar_lea.sflag [#allocation4], %s551
        %s553 = sand.u32 %s97, 1
        %s554 = smul.addr %s553, 128
        %s555 = scalar_lea.vmem [#allocation8], %s554
        // Predicated region
        $region45: #{tpu_custom_call.1} parent=31 // pred_check
          %p556 = pneg %p107
        $region46: #{tpu_custom_call.1} parent=31 // pred_check_branch
          %558 = sbr.rel (%p556) target = $region48
        $region47: #{tpu_custom_call.1} parent=31 // pred_region
          %s559 = smul.u32 16, %s21
          %561 = vsyncadd %s552, 0
          %s562 = smul.addr %s559, 8
          %s563 = scalar_lea.hbm %s3, %s562
          %s564 = sshll.u32 %s555, 4
          %s565 = int_to_ptr.vmem [resolvable:$true] %s564
          %s566 = sshll.u32 %s563, 4
          %s567 = int_to_ptr.hbm [resolvable:$true] %s566
          %572 = dma.vmem_to_hbm [thread:$0]  %s565, 2048, %s567, %s552, 128, 128, 8
        $region48: #{tpu_custom_call.1} parent=31 // pred_fallthru
          _
      $region32: #{tpu_custom_call.1} parent=5 // pred_fallthru
        _
      %p573 = scmp.le.s32.totalorder 2, %s16
      // Predicated region
      $region49: #{tpu_custom_call.1} parent=5 // pred_check
        %p574 = pneg %p573
      $region50: #{tpu_custom_call.1} parent=5 // pred_check_branch
        %576 = sbr.rel (%p574) target = $region52
      $region51: #{tpu_custom_call.1} parent=5 // pred_region
        %s577 = ssub.s32 %s16, 2
        // Predicated region
        $region53: #{tpu_custom_call.1} parent=51 // pred_check
          %p578 = pneg %p113
        $region54: #{tpu_custom_call.1} parent=51 // pred_check_branch
          %580 = sbr.rel (%p578) target = $region56
        $region55: #{tpu_custom_call.1} parent=51 // pred_region
          %s581 = sand.u32 %s98, 1
          %s582 = scalar_lea.sflag [#allocation4], %s581
          %s583 = sand.u32 %s98, 1
          %s584 = smul.addr %s583, 128
          %s585 = scalar_lea.vmem [#allocation8], %s584
          %587 = dma.done %s582, 2048
        $region56: #{tpu_custom_call.1} parent=51 // pred_fallthru
          _
      $region52: #{tpu_custom_call.1} parent=5 // pred_fallthru
        _
    $region6: #{tpu_custom_call.1} parent=1 // loop_footer
      %s20 = sadd.s32 1, %s16
    $region7: #{tpu_custom_call.1} parent=1 // loop_footer_branch
      %15 = sbr.rel target = $region3
    $region8: #{tpu_custom_call.1} parent=1 // loop_exit
      _
    %588 = vsyncpa [#allocation3], 1
    %s589 = scalar_lea.sflag [#allocation3], 1
    %590 = vsyncpa %s589, 1
    %591 = vsyncpa [#allocation6], 1
    %592 = vsyncpa [#allocation4], 1
    %s593 = scalar_lea.sflag [#allocation4], 1
    %594 = vsyncpa %s593, 1

</llo_original>
